<compile_context>
chip_gen: v5e
topology: v5e:2x2
jax: 0.10.0
libtpu: 0.0.40
codegen_flags: <defaults>
</compile_context>

<pallas_src>
import functools
import math

import jax
import jax.numpy as jnp
from jax.experimental import pallas as pl
from jax.experimental.pallas import tpu as pltpu


def _row_tile(M):
    # Largest row tile that comfortably double-buffers in VMEM; at the shapes
    # used here a single block covers everything.
    return M if M <= 512 else 512


# ----------------------------------------------------------------------------
# Kernel 1: fused complex q/k/v projection (one matmul pair for all of q,k,v,
# real and imag).  y = xr @ W_top + xi @ W_bot + b, with columns [q | k | v],
# each 2D wide, head-interleaved as [h: real(d), imag(d)].
# ----------------------------------------------------------------------------
def _qkv_proj_kernel(xr_ref, xi_ref, wt_ref, wb_ref, b_ref,
                     q_ref, k_ref, v_ref, *, twoD):
    y = (jnp.dot(xr_ref[...], wt_ref[...], preferred_element_type=jnp.float32)
         + jnp.dot(xi_ref[...], wb_ref[...], preferred_element_type=jnp.float32)
         + b_ref[...])
    q_ref[...] = y[:, :twoD]
    k_ref[...] = y[:, twoD:2 * twoD]
    v_ref[...] = y[:, 2 * twoD:]


def qkv_projection(xr2, xi2, w_top, w_bot, b):
    M, D = xr2.shape
    twoD = 2 * D
    sixD = b.shape[1]
    tm = _row_tile(M)
    grid = (pl.cdiv(M, tm),)
    x_spec = pl.BlockSpec((tm, D), lambda i: (i, 0))
    y_spec = pl.BlockSpec((tm, twoD), lambda i: (i, 0))

    def const(shp):
        return pl.BlockSpec(shp, lambda i: (0, 0))   # weights stay VMEM-resident

    q, k, v = pl.pallas_call(
        functools.partial(_qkv_proj_kernel, twoD=twoD),
        out_shape=tuple(jax.ShapeDtypeStruct((M, twoD), jnp.float32)
                        for _ in range(3)),
        grid=grid,
        in_specs=[x_spec, x_spec, const((D, sixD)), const((D, sixD)),
                  const((1, sixD))],
        out_specs=(y_spec, y_spec, y_spec),
        compiler_params=pltpu.CompilerParams(
            dimension_semantics=("parallel",)),
    )(xr2, xi2, w_top, w_bot, b)
    return q, k, v


# ----------------------------------------------------------------------------
# Kernel 2: complex attention core, one batch per grid step, heads processed
# inside the kernel on a lane-dense (T, 2D) block (layout [h: qr(d) | qi(d)]).
# ----------------------------------------------------------------------------
def _attn_kernel(q_ref, k_ref, v_ref, o_ref, *, num_heads, head_dim):
    q = q_ref[...]            # (T, 2D), 1/sqrt(d) already folded into weights
    k = k_ref[...]
    v = v_ref[...]
    dn = (((1,), (1,)), ((), ()))
    td = 2 * head_dim
    outs = []
    for h in range(num_heads):
        sl = slice(h * td, (h + 1) * td)
        # Re(q conj(k)^T) for head h in one MXU call: contract [qr|qi]·[kr|ki].
        s = jax.lax.dot_general(q[:, sl], k[:, sl], dn,
                                preferred_element_type=jnp.float32)
        m = jnp.max(s, axis=-1, keepdims=True)
        e = jnp.exp(s - m)
        inv = 1.0 / jnp.sum(e, axis=-1, keepdims=True)
        # softmax(s) @ [vr|vi]  ==  (e @ [vr|vi]) * inv  (scale the smaller matrix)
        outs.append(jnp.dot(e, v[:, sl],
                            preferred_element_type=jnp.float32) * inv)
    o_ref[...] = jnp.concatenate(outs, axis=1)


def complex_attention(q, k, v, num_heads, head_dim):
    B, T, twoD = q.shape
    spec = pl.BlockSpec((None, T, twoD), lambda b: (b, 0, 0))
    return pl.pallas_call(
        functools.partial(_attn_kernel, num_heads=num_heads,
                          head_dim=head_dim),
        out_shape=jax.ShapeDtypeStruct((B, T, twoD), jnp.float32),
        grid=(B,),
        in_specs=[spec, spec, spec],
        out_specs=spec,
        compiler_params=pltpu.CompilerParams(
            dimension_semantics=("parallel",)),
    )(q, k, v)


# ----------------------------------------------------------------------------
# Kernel 3: fused complex output projection.  Input is the attention output in
# its head-interleaved layout (rows of W already permuted to match); outputs
# yr / yi are emitted separately.
# ----------------------------------------------------------------------------
def _out_proj_kernel(x_ref, w_ref, b_ref, yr_ref, yi_ref, *, D):
    y = (jnp.dot(x_ref[...], w_ref[...], preferred_element_type=jnp.float32)
         + b_ref[...])
    yr_ref[...] = y[:, :D]
    yi_ref[...] = y[:, D:]


def out_projection(x, w, b):
    M, twoD = x.shape
    D = twoD // 2
    tm = _row_tile(M)
    grid = (pl.cdiv(M, tm),)
    yr, yi = pl.pallas_call(
        functools.partial(_out_proj_kernel, D=D),
        out_shape=(jax.ShapeDtypeStruct((M, D), jnp.float32),
                   jax.ShapeDtypeStruct((M, D), jnp.float32)),
        grid=grid,
        in_specs=[pl.BlockSpec((tm, twoD), lambda i: (i, 0)),
                  pl.BlockSpec((twoD, twoD), lambda i: (0, 0)),
                  pl.BlockSpec((1, twoD), lambda i: (0, 0))],
        out_specs=(pl.BlockSpec((tm, D), lambda i: (i, 0)),
                   pl.BlockSpec((tm, D), lambda i: (i, 0))),
        compiler_params=pltpu.CompilerParams(
            dimension_semantics=("parallel",)),
    )(x, w, b)
    return yr, yi


# ----------------------------------------------------------------------------
# Parameter fusion (done once, outside the kernels).
#   real(y) = x_r @ wr - x_i @ wi + (br - bi)
#   imag(y) = x_i @ wr + x_r @ wi + (br + bi)
# ----------------------------------------------------------------------------
def _fuse_complex_columns(wr, wi, br, bi, num_heads, head_dim):
    """(2D, 2D)/(2D,) fused real weight for input [xr | xi], output columns
    interleaved per head as [h: real(d) | imag(d)]."""
    D = wr.shape[0]
    H, d = num_heads, head_dim
    w_real = jnp.concatenate([wr, -wi], axis=0)        # -> real output columns
    w_imag = jnp.concatenate([wi, wr], axis=0)         # -> imag output columns
    w = jnp.concatenate([w_real.reshape(2 * D, H, d),
                         w_imag.reshape(2 * D, H, d)], axis=2)
    w = w.reshape(2 * D, 2 * D)
    b = jnp.concatenate([(br - bi).reshape(H, d),
                         (br + bi).reshape(H, d)], axis=1).reshape(2 * D)
    return w, b


def fuse_params(params, num_heads, embed_dim):
    D, H = embed_dim, num_heads
    d = D // H
    scale = 1.0 / math.sqrt(d)

    wq, bq = _fuse_complex_columns(*params["q"], H, d)
    wk, bk = _fuse_complex_columns(*params["k"], H, d)
    wv, bv = _fuse_complex_columns(*params["v"], H, d)
    wq, bq = wq * scale, bq * scale          # fold 1/sqrt(d) into q projection
    w_qkv = jnp.concatenate([wq, wk, wv], axis=1)            # (2D, 6D)
    b_qkv = jnp.concatenate([bq, bk, bv]).reshape(1, 6 * D)

    # Output projection: rows permuted to consume the attention output's
    # head-interleaved [real|imag] layout; columns are [yr | yi].
    wr, wi, br, bi = params["o"]
    w_std = jnp.concatenate(
        [jnp.concatenate([wr, wi], axis=1),
         jnp.concatenate([-wi, wr], axis=1)], axis=0)        # (2D, 2D)
    row_perm = (jnp.arange(H)[:, None, None] * d
                + jnp.arange(2)[None, :, None] * D
                + jnp.arange(d)[None, None, :]).reshape(2 * D)
    w_o = w_std[row_perm, :]
    b_o = jnp.concatenate([br - bi, br + bi]).reshape(1, 2 * D)

    return {"w_qkv_top": w_qkv[:D], "w_qkv_bot": w_qkv[D:], "b_qkv": b_qkv,
            "w_o": w_o, "b_o": b_o}


# ----------------------------------------------------------------------------
# Full module forward (layout plumbing only; hot paths are the Pallas kernels)
# ----------------------------------------------------------------------------
@functools.partial(jax.jit, static_argnames=("num_heads",))
def complex_mha_forward(xr, xi, fused, num_heads):
    B, T, D = xr.shape
    H = num_heads
    d = D // H
    M = B * T
    q, k, v = qkv_projection(xr.reshape(M, D), xi.reshape(M, D),
                             fused["w_qkv_top"], fused["w_qkv_bot"],
                             fused["b_qkv"])
    q = q.reshape(B, T, 2 * D)       # free bitcast reshapes, no transposes
    k = k.reshape(B, T, 2 * D)
    v = v.reshape(B, T, 2 * D)
    attn = complex_attention(q, k, v, H, d)                  # (B, T, 2D)
    yr, yi = out_projection(attn.reshape(M, 2 * D), fused["w_o"], fused["b_o"])
    return yr.reshape(B, T, D), yi.reshape(B, T, D)


# ----------------------------------------------------------------------------
# Pure-JAX reference (mirrors the PyTorch module semantics exactly)
# ----------------------------------------------------------------------------
def ref_forward(xr, xi, params, num_heads):
    x = xr + 1j * xi

    def clin(x, wr, wi, br, bi):
        real = (x.real @ wr + br) - (x.imag @ wi + bi)
        imag = (x.imag @ wr + br) + (x.real @ wi + bi)
        return real + 1j * imag

    B, T, D = x.shape
    H = num_heads
    d = D // H
    q = clin(x, *params["q"]).reshape(B, T, H, d).transpose(0, 2, 1, 3)
    k = clin(x, *params["k"]).reshape(B, T, H, d).transpose(0, 2, 1, 3)
    v = clin(x, *params["v"]).reshape(B, T, H, d).transpose(0, 2, 1, 3)
    scores = jnp.einsum("bhid,bhjd->bhij", q, jnp.conj(k)).real / math.sqrt(d)
    probs = jax.nn.softmax(scores, axis=-1)
    out = jnp.einsum("bhij,bhjd->bhid", probs.astype(v.dtype), v)
    out = out.transpose(0, 2, 1, 3).reshape(B, T, D)
    y = clin(out, *params["o"])
    return y.real, y.imag


# ----------------------------------------------------------------------------
# Deterministic parameter init (PyTorch nn.Linear default: U(-1/sqrt(in), +))
# ----------------------------------------------------------------------------
def init_complex_linear(key, din, dout):
    ks = jax.random.split(key, 4)
    bound = 1.0 / math.sqrt(din)
    wr = jax.random.uniform(ks[0], (din, dout), jnp.float32, -bound, bound)
    wi = jax.random.uniform(ks[1], (din, dout), jnp.float32, -bound, bound)
    br = jax.random.uniform(ks[2], (dout,), jnp.float32, -bound, bound)
    bi = jax.random.uniform(ks[3], (dout,), jnp.float32, -bound, bound)
    return wr, wi, br, bi


if __name__ == "__main__":
    B, T, D, H = 2, 8, 32, 4

    key = jax.random.PRNGKey(0)
    kx_r, kx_i, kq, kk, kv, ko = jax.random.split(key, 6)

    params = {
        "q": init_complex_linear(kq, D, D),
        "k": init_complex_linear(kk, D, D),
        "v": init_complex_linear(kv, D, D),
        "o": init_complex_linear(ko, D, D),
    }

    x_real = jax.random.normal(kx_r, (B, T, D), jnp.float32)
    x_imag = jax.random.normal(kx_i, (B, T, D), jnp.float32)

    fused = fuse_params(params, H, D)
    yr, yi = complex_mha_forward(x_real, x_imag, fused, num_heads=H)
    jax.block_until_ready((yr, yi))

    yr_ref, yi_ref = ref_forward(x_real, x_imag, params, H)

    assert yr.shape == (B, T, D) and yi.shape == (B, T, D)
    assert jnp.allclose(yr, yr_ref, atol=2e-4, rtol=2e-4)
    assert jnp.allclose(yi, yi_ref, atol=2e-4, rtol=2e-4)

    print("KERNEL_OK")
</pallas_src>

<mosaic_0001>
module attributes {stable_mosaic.version = 11 : i64} {
  func.func @_out_proj_kernel(%arg0: i32, %arg1: memref<16x64xf32, #tpu.memory_space<vmem>>, %arg2: memref<64x64xf32, #tpu.memory_space<vmem>>, %arg3: memref<1x64xf32, #tpu.memory_space<vmem>>, %arg4: memref<16x32xf32, #tpu.memory_space<vmem>>, %arg5: memref<16x32xf32, #tpu.memory_space<vmem>>) attributes {dimension_semantics = [#tpu.dimension_semantics<parallel>], iteration_bounds = array<i64: 1>, scalar_prefetch = 0 : i64, scratch_operands = 0 : i64, tpu.core_type = #tpu.core_type<tc>, window_params = [{transform_indices = @transform_0, window_bounds = array<i64: 16, 64>}, {pipeline_mode = #tpu.pipeline_mode<synchronous>, transform_indices = @transform_1, window_bounds = array<i64: 64, 64>}, {pipeline_mode = #tpu.pipeline_mode<synchronous>, transform_indices = @transform_2, window_bounds = array<i64: 1, 64>}, {transform_indices = @transform_3, window_bounds = array<i64: 16, 32>}, {transform_indices = @transform_4, window_bounds = array<i64: 16, 32>}]} {
    %c0 = arith.constant 0 : index
    %c0_0 = arith.constant 0 : index
    %0 = vector.load %arg1[%c0, %c0_0] : memref<16x64xf32, #tpu.memory_space<vmem>>, vector<16x64xf32>
    %c0_1 = arith.constant 0 : index
    %c0_2 = arith.constant 0 : index
    %1 = vector.load %arg2[%c0_1, %c0_2] : memref<64x64xf32, #tpu.memory_space<vmem>>, vector<64x64xf32>
    %cst = arith.constant dense<0.000000e+00> : vector<16x64xf32>
    %2 = tpu.matmul %0, %1, %cst {dimension_numbers = #tpu.dot_dimension_numbers<[1], [0], [0], [1], [0, 0, 1, 1], [], []>} : vector<16x64xf32>, vector<64x64xf32>, vector<16x64xf32> -> vector<16x64xf32>
    %c0_3 = arith.constant 0 : index
    %c0_4 = arith.constant 0 : index
    %3 = vector.load %arg3[%c0_3, %c0_4] : memref<1x64xf32, #tpu.memory_space<vmem>>, vector<1x64xf32>
    %4 = vector.broadcast %3 : vector<1x64xf32> to vector<16x64xf32>
    %5 = arith.addf %2, %4 : vector<16x64xf32>
    %6 = vector.extract_strided_slice %5 {offsets = [0, 0], sizes = [16, 32], strides = [1, 1]} : vector<16x64xf32> to vector<16x32xf32>
    %c0_5 = arith.constant 0 : index
    %c0_6 = arith.constant 0 : index
    %7 = vector.load %arg4[%c0_5, %c0_6] : memref<16x32xf32, #tpu.memory_space<vmem>>, vector<16x32xf32>
    tpu.vector_store %arg4[%c0_5, %c0_6], %6 {strides = array<i32>} : memref<16x32xf32, #tpu.memory_space<vmem>>, vector<16x32xf32>,
    %8 = vector.extract_strided_slice %5 {offsets = [0, 32], sizes = [16, 32], strides = [1, 1]} : vector<16x64xf32> to vector<16x32xf32>
    %c0_7 = arith.constant 0 : index
    %c0_8 = arith.constant 0 : index
    %9 = vector.load %arg5[%c0_7, %c0_8] : memref<16x32xf32, #tpu.memory_space<vmem>>, vector<16x32xf32>
    tpu.vector_store %arg5[%c0_7, %c0_8], %8 {strides = array<i32>} : memref<16x32xf32, #tpu.memory_space<vmem>>, vector<16x32xf32>,
    return
  }
  func.func @transform_0(%arg0: i32) -> (i32, i32) {
    %c0_i32 = arith.constant 0 : i32
    %c0_i32_0 = arith.constant 0 : i32
    return %arg0, %c0_i32 : i32, i32
  }
  func.func @transform_1(%arg0: i32) -> (i32, i32) {
    %c0_i32 = arith.constant 0 : i32
    %c0_i32_0 = arith.constant 0 : i32
    %c0_i32_1 = arith.constant 0 : i32
    return %c0_i32, %c0_i32_0 : i32, i32
  }
  func.func @transform_2(%arg0: i32) -> (i32, i32) {
    %c0_i32 = arith.constant 0 : i32
    %c0_i32_0 = arith.constant 0 : i32
    %c0_i32_1 = arith.constant 0 : i32
    return %c0_i32, %c0_i32_0 : i32, i32
  }
  func.func @transform_3(%arg0: i32) -> (i32, i32) {
    %c0_i32 = arith.constant 0 : i32
    %c0_i32_0 = arith.constant 0 : i32
    return %arg0, %c0_i32 : i32, i32
  }
  func.func @transform_4(%arg0: i32) -> (i32, i32) {
    %c0_i32 = arith.constant 0 : i32
    %c0_i32_0 = arith.constant 0 : i32
    return %arg0, %c0_i32 : i32, i32
  }
}

module attributes {stable_mosaic.version = 11 : i64} {
  func.func @_qkv_proj_kernel(%arg0: i32, %arg1: memref<16x32xf32, #tpu.memory_space<vmem>>, %arg2: memref<16x32xf32, #tpu.memory_space<vmem>>, %arg3: memref<32x192xf32, #tpu.memory_space<vmem>>, %arg4: memref<32x192xf32, #tpu.memory_space<vmem>>, %arg5: memref<1x192xf32, #tpu.memory_space<vmem>>, %arg6: memref<16x64xf32, #tpu.memory_space<vmem>>, %arg7: memref<16x64xf32, #tpu.memory_space<vmem>>, %arg8: memref<16x64xf32, #tpu.memory_space<vmem>>) attributes {dimension_semantics = [#tpu.dimension_semantics<parallel>], iteration_bounds = array<i64: 1>, scalar_prefetch = 0 : i64, scratch_operands = 0 : i64, tpu.core_type = #tpu.core_type<tc>, window_params = [{transform_indices = @transform_0, window_bounds = array<i64: 16, 32>}, {transform_indices = @transform_1, window_bounds = array<i64: 16, 32>}, {pipeline_mode = #tpu.pipeline_mode<synchronous>, transform_indices = @transform_2, window_bounds = array<i64: 32, 192>}, {pipeline_mode = #tpu.pipeline_mode<synchronous>, transform_indices = @transform_3, window_bounds = array<i64: 32, 192>}, {pipeline_mode = #tpu.pipeline_mode<synchronous>, transform_indices = @transform_4, window_bounds = array<i64: 1, 192>}, {transform_indices = @transform_5, window_bounds = array<i64: 16, 64>}, {transform_indices = @transform_6, window_bounds = array<i64: 16, 64>}, {transform_indices = @transform_7, window_bounds = array<i64: 16, 64>}]} {
    %c0 = arith.constant 0 : index
    %c0_0 = arith.constant 0 : index
    %0 = vector.load %arg1[%c0, %c0_0] : memref<16x32xf32, #tpu.memory_space<vmem>>, vector<16x32xf32>
    %c0_1 = arith.constant 0 : index
    %c0_2 = arith.constant 0 : index
    %1 = vector.load %arg3[%c0_1, %c0_2] : memref<32x192xf32, #tpu.memory_space<vmem>>, vector<32x192xf32>
    %cst = arith.constant dense<0.000000e+00> : vector<16x192xf32>
    %2 = tpu.matmul %0, %1, %cst {dimension_numbers = #tpu.dot_dimension_numbers<[1], [0], [0], [1], [0, 0, 1, 1], [], []>} : vector<16x32xf32>, vector<32x192xf32>, vector<16x192xf32> -> vector<16x192xf32>
    %c0_3 = arith.constant 0 : index
    %c0_4 = arith.constant 0 : index
    %3 = vector.load %arg2[%c0_3, %c0_4] : memref<16x32xf32, #tpu.memory_space<vmem>>, vector<16x32xf32>
    %c0_5 = arith.constant 0 : index
    %c0_6 = arith.constant 0 : index
    %4 = vector.load %arg4[%c0_5, %c0_6] : memref<32x192xf32, #tpu.memory_space<vmem>>, vector<32x192xf32>
    %cst_7 = arith.constant dense<0.000000e+00> : vector<16x192xf32>
    %5 = tpu.matmul %3, %4, %cst_7 {dimension_numbers = #tpu.dot_dimension_numbers<[1], [0], [0], [1], [0, 0, 1, 1], [], []>} : vector<16x32xf32>, vector<32x192xf32>, vector<16x192xf32> -> vector<16x192xf32>
    %6 = arith.addf %2, %5 : vector<16x192xf32>
    %c0_8 = arith.constant 0 : index
    %c0_9 = arith.constant 0 : index
    %7 = vector.load %arg5[%c0_8, %c0_9] : memref<1x192xf32, #tpu.memory_space<vmem>>, vector<1x192xf32>
    %8 = vector.broadcast %7 : vector<1x192xf32> to vector<16x192xf32>
    %9 = arith.addf %6, %8 : vector<16x192xf32>
    %10 = vector.extract_strided_slice %9 {offsets = [0, 0], sizes = [16, 64], strides = [1, 1]} : vector<16x192xf32> to vector<16x64xf32>
    %c0_10 = arith.constant 0 : index
    %c0_11 = arith.constant 0 : index
    %11 = vector.load %arg6[%c0_10, %c0_11] : memref<16x64xf32, #tpu.memory_space<vmem>>, vector<16x64xf32>
    tpu.vector_store %arg6[%c0_10, %c0_11], %10 {strides = array<i32>} : memref<16x64xf32, #tpu.memory_space<vmem>>, vector<16x64xf32>,
    %12 = vector.extract_strided_slice %9 {offsets = [0, 64], sizes = [16, 64], strides = [1, 1]} : vector<16x192xf32> to vector<16x64xf32>
    %c0_12 = arith.constant 0 : index
    %c0_13 = arith.constant 0 : index
    %13 = vector.load %arg7[%c0_12, %c0_13] : memref<16x64xf32, #tpu.memory_space<vmem>>, vector<16x64xf32>
    tpu.vector_store %arg7[%c0_12, %c0_13], %12 {strides = array<i32>} : memref<16x64xf32, #tpu.memory_space<vmem>>, vector<16x64xf32>,
    %14 = vector.extract_strided_slice %9 {offsets = [0, 128], sizes = [16, 64], strides = [1, 1]} : vector<16x192xf32> to vector<16x64xf32>
    %c0_14 = arith.constant 0 : index
    %c0_15 = arith.constant 0 : index
    %15 = vector.load %arg8[%c0_14, %c0_15] : memref<16x64xf32, #tpu.memory_space<vmem>>, vector<16x64xf32>
    tpu.vector_store %arg8[%c0_14, %c0_15], %14 {strides = array<i32>} : memref<16x64xf32, #tpu.memory_space<vmem>>, vector<16x64xf32>,
    return
  }
  func.func @transform_0(%arg0: i32) -> (i32, i32) {
    %c0_i32 = arith.constant 0 : i32
    %c0_i32_0 = arith.constant 0 : i32
    return %arg0, %c0_i32 : i32, i32
  }
  func.func @transform_1(%arg0: i32) -> (i32, i32) {
    %c0_i32 = arith.constant 0 : i32
    %c0_i32_0 = arith.constant 0 : i32
    return %arg0, %c0_i32 : i32, i32
  }
  func.func @transform_2(%arg0: i32) -> (i32, i32) {
    %c0_i32 = arith.constant 0 : i32
    %c0_i32_0 = arith.constant 0 : i32
    %c0_i32_1 = arith.constant 0 : i32
    return %c0_i32, %c0_i32_0 : i32, i32
  }
  func.func @transform_3(%arg0: i32) -> (i32, i32) {
    %c0_i32 = arith.constant 0 : i32
    %c0_i32_0 = arith.constant 0 : i32
    %c0_i32_1 = arith.constant 0 : i32
    return %c0_i32, %c0_i32_0 : i32, i32
  }
  func.func @transform_4(%arg0: i32) -> (i32, i32) {
    %c0_i32 = arith.constant 0 : i32
    %c0_i32_0 = arith.constant 0 : i32
    %c0_i32_1 = arith.constant 0 : i32
    return %c0_i32, %c0_i32_0 : i32, i32
  }
  func.func @transform_5(%arg0: i32) -> (i32, i32) {
    %c0_i32 = arith.constant 0 : i32
    %c0_i32_0 = arith.constant 0 : i32
    return %arg0, %c0_i32 : i32, i32
  }
  func.func @transform_6(%arg0: i32) -> (i32, i32) {
    %c0_i32 = arith.constant 0 : i32
    %c0_i32_0 = arith.constant 0 : i32
    return %arg0, %c0_i32 : i32, i32
  }
  func.func @transform_7(%arg0: i32) -> (i32, i32) {
    %c0_i32 = arith.constant 0 : i32
    %c0_i32_0 = arith.constant 0 : i32
    return %arg0, %c0_i32 : i32, i32
  }
}

module attributes {stable_mosaic.version = 11 : i64} {
  func.func @_attn_kernel(%arg0: i32, %arg1: memref<1x8x64xf32, #tpu.memory_space<vmem>>, %arg2: memref<1x8x64xf32, #tpu.memory_space<vmem>>, %arg3: memref<1x8x64xf32, #tpu.memory_space<vmem>>, %arg4: memref<1x8x64xf32, #tpu.memory_space<vmem>>) attributes {dimension_semantics = [#tpu.dimension_semantics<parallel>], iteration_bounds = array<i64: 2>, scalar_prefetch = 0 : i64, scratch_operands = 0 : i64, tpu.core_type = #tpu.core_type<tc>, window_params = [{transform_indices = @transform_0, window_bounds = array<i64: 1, 8, 64>}, {transform_indices = @transform_1, window_bounds = array<i64: 1, 8, 64>}, {transform_indices = @transform_2, window_bounds = array<i64: 1, 8, 64>}, {transform_indices = @transform_3, window_bounds = array<i64: 1, 8, 64>}]} {
    %c0 = arith.constant 0 : index
    %c0_0 = arith.constant 0 : index
    %c0_1 = arith.constant 0 : index
    %0 = vector.load %arg1[%c0, %c0_0, %c0_1] : memref<1x8x64xf32, #tpu.memory_space<vmem>>, vector<1x8x64xf32>
    %1 = vector.shape_cast %0 : vector<1x8x64xf32> to vector<8x64xf32>
    %c0_2 = arith.constant 0 : index
    %c0_3 = arith.constant 0 : index
    %c0_4 = arith.constant 0 : index
    %2 = vector.load %arg2[%c0_2, %c0_3, %c0_4] : memref<1x8x64xf32, #tpu.memory_space<vmem>>, vector<1x8x64xf32>
    %3 = vector.shape_cast %2 : vector<1x8x64xf32> to vector<8x64xf32>
    %c0_5 = arith.constant 0 : index
    %c0_6 = arith.constant 0 : index
    %c0_7 = arith.constant 0 : index
    %4 = vector.load %arg3[%c0_5, %c0_6, %c0_7] : memref<1x8x64xf32, #tpu.memory_space<vmem>>, vector<1x8x64xf32>
    %5 = vector.shape_cast %4 : vector<1x8x64xf32> to vector<8x64xf32>
    %6 = vector.extract_strided_slice %1 {offsets = [0, 0], sizes = [8, 16], strides = [1, 1]} : vector<8x64xf32> to vector<8x16xf32>
    %7 = vector.extract_strided_slice %3 {offsets = [0, 0], sizes = [8, 16], strides = [1, 1]} : vector<8x64xf32> to vector<8x16xf32>
    %cst = arith.constant dense<0.000000e+00> : vector<8x8xf32>
    %8 = tpu.matmul %6, %7, %cst {dimension_numbers = #tpu.dot_dimension_numbers<[1], [1], [0], [0], [0, 0, 1, 0], [], []>} : vector<8x16xf32>, vector<8x16xf32>, vector<8x8xf32> -> vector<8x8xf32>
    %cst_8 = arith.constant dense<0xFF800000> : vector<8xf32>
    %9 = vector.multi_reduction <maximumf>, %8, %cst_8 [1] : vector<8x8xf32> to vector<8xf32>
    %10 = vector.shape_cast %9 : vector<8xf32> to vector<8x1xf32>
    %11 = vector.broadcast %10 : vector<8x1xf32> to vector<8x8xf32>
    %12 = arith.subf %8, %11 : vector<8x8xf32>
    %13 = math.exp %12 : vector<8x8xf32>
    %cst_9 = arith.constant dense<0.000000e+00> : vector<8xf32>
    %14 = vector.multi_reduction <add>, %13, %cst_9 [1] : vector<8x8xf32> to vector<8xf32>
    %15 = vector.shape_cast %14 : vector<8xf32> to vector<8x1xf32>
    %cst_10 = arith.constant 1.000000e+00 : f32
    %16 = vector.broadcast %cst_10 : f32 to vector<8x1xf32>
    %17 = arith.divf %16, %15 : vector<8x1xf32>
    %18 = vector.extract_strided_slice %5 {offsets = [0, 0], sizes = [8, 16], strides = [1, 1]} : vector<8x64xf32> to vector<8x16xf32>
    %cst_11 = arith.constant dense<0.000000e+00> : vector<8x16xf32>
    %19 = tpu.matmul %13, %18, %cst_11 {dimension_numbers = #tpu.dot_dimension_numbers<[1], [0], [0], [1], [0, 0, 1, 1], [], []>} : vector<8x8xf32>, vector<8x16xf32>, vector<8x16xf32> -> vector<8x16xf32>
    %20 = vector.broadcast %17 : vector<8x1xf32> to vector<8x16xf32>
    %21 = arith.mulf %19, %20 : vector<8x16xf32>
    %22 = vector.extract_strided_slice %1 {offsets = [0, 16], sizes = [8, 16], strides = [1, 1]} : vector<8x64xf32> to vector<8x16xf32>
    %23 = vector.extract_strided_slice %3 {offsets = [0, 16], sizes = [8, 16], strides = [1, 1]} : vector<8x64xf32> to vector<8x16xf32>
    %cst_12 = arith.constant dense<0.000000e+00> : vector<8x8xf32>
    %24 = tpu.matmul %22, %23, %cst_12 {dimension_numbers = #tpu.dot_dimension_numbers<[1], [1], [0], [0], [0, 0, 1, 0], [], []>} : vector<8x16xf32>, vector<8x16xf32>, vector<8x8xf32> -> vector<8x8xf32>
    %cst_13 = arith.constant dense<0xFF800000> : vector<8xf32>
    %25 = vector.multi_reduction <maximumf>, %24, %cst_13 [1] : vector<8x8xf32> to vector<8xf32>
    %26 = vector.shape_cast %25 : vector<8xf32> to vector<8x1xf32>
    %27 = vector.broadcast %26 : vector<8x1xf32> to vector<8x8xf32>
    %28 = arith.subf %24, %27 : vector<8x8xf32>
    %29 = math.exp %28 : vector<8x8xf32>
    %cst_14 = arith.constant dense<0.000000e+00> : vector<8xf32>
    %30 = vector.multi_reduction <add>, %29, %cst_14 [1] : vector<8x8xf32> to vector<8xf32>
    %31 = vector.shape_cast %30 : vector<8xf32> to vector<8x1xf32>
    %cst_15 = arith.constant 1.000000e+00 : f32
    %32 = vector.broadcast %cst_15 : f32 to vector<8x1xf32>
    %33 = arith.divf %32, %31 : vector<8x1xf32>
    %34 = vector.extract_strided_slice %5 {offsets = [0, 16], sizes = [8, 16], strides = [1, 1]} : vector<8x64xf32> to vector<8x16xf32>
    %cst_16 = arith.constant dense<0.000000e+00> : vector<8x16xf32>
    %35 = tpu.matmul %29, %34, %cst_16 {dimension_numbers = #tpu.dot_dimension_numbers<[1], [0], [0], [1], [0, 0, 1, 1], [], []>} : vector<8x8xf32>, vector<8x16xf32>, vector<8x16xf32> -> vector<8x16xf32>
    %36 = vector.broadcast %33 : vector<8x1xf32> to vector<8x16xf32>
    %37 = arith.mulf %35, %36 : vector<8x16xf32>
    %38 = vector.extract_strided_slice %1 {offsets = [0, 32], sizes = [8, 16], strides = [1, 1]} : vector<8x64xf32> to vector<8x16xf32>
    %39 = vector.extract_strided_slice %3 {offsets = [0, 32], sizes = [8, 16], strides = [1, 1]} : vector<8x64xf32> to vector<8x16xf32>
    %cst_17 = arith.constant dense<0.000000e+00> : vector<8x8xf32>
    %40 = tpu.matmul %38, %39, %cst_17 {dimension_numbers = #tpu.dot_dimension_numbers<[1], [1], [0], [0], [0, 0, 1, 0], [], []>} : vector<8x16xf32>, vector<8x16xf32>, vector<8x8xf32> -> vector<8x8xf32>
    %cst_18 = arith.constant dense<0xFF800000> : vector<8xf32>
    %41 = vector.multi_reduction <maximumf>, %40, %cst_18 [1] : vector<8x8xf32> to vector<8xf32>
    %42 = vector.shape_cast %41 : vector<8xf32> to vector<8x1xf32>
    %43 = vector.broadcast %42 : vector<8x1xf32> to vector<8x8xf32>
    %44 = arith.subf %40, %43 : vector<8x8xf32>
    %45 = math.exp %44 : vector<8x8xf32>
    %cst_19 = arith.constant dense<0.000000e+00> : vector<8xf32>
    %46 = vector.multi_reduction <add>, %45, %cst_19 [1] : vector<8x8xf32> to vector<8xf32>
    %47 = vector.shape_cast %46 : vector<8xf32> to vector<8x1xf32>
    %cst_20 = arith.constant 1.000000e+00 : f32
    %48 = vector.broadcast %cst_20 : f32 to vector<8x1xf32>
    %49 = arith.divf %48, %47 : vector<8x1xf32>
    %50 = vector.extract_strided_slice %5 {offsets = [0, 32], sizes = [8, 16], strides = [1, 1]} : vector<8x64xf32> to vector<8x16xf32>
    %cst_21 = arith.constant dense<0.000000e+00> : vector<8x16xf32>
    %51 = tpu.matmul %45, %50, %cst_21 {dimension_numbers = #tpu.dot_dimension_numbers<[1], [0], [0], [1], [0, 0, 1, 1], [], []>} : vector<8x8xf32>, vector<8x16xf32>, vector<8x16xf32> -> vector<8x16xf32>
    %52 = vector.broadcast %49 : vector<8x1xf32> to vector<8x16xf32>
    %53 = arith.mulf %51, %52 : vector<8x16xf32>
    %54 = vector.extract_strided_slice %1 {offsets = [0, 48], sizes = [8, 16], strides = [1, 1]} : vector<8x64xf32> to vector<8x16xf32>
    %55 = vector.extract_strided_slice %3 {offsets = [0, 48], sizes = [8, 16], strides = [1, 1]} : vector<8x64xf32> to vector<8x16xf32>
    %cst_22 = arith.constant dense<0.000000e+00> : vector<8x8xf32>
    %56 = tpu.matmul %54, %55, %cst_22 {dimension_numbers = #tpu.dot_dimension_numbers<[1], [1], [0], [0], [0, 0, 1, 0], [], []>} : vector<8x16xf32>, vector<8x16xf32>, vector<8x8xf32> -> vector<8x8xf32>
    %cst_23 = arith.constant dense<0xFF800000> : vector<8xf32>
    %57 = vector.multi_reduction <maximumf>, %56, %cst_23 [1] : vector<8x8xf32> to vector<8xf32>
    %58 = vector.shape_cast %57 : vector<8xf32> to vector<8x1xf32>
    %59 = vector.broadcast %58 : vector<8x1xf32> to vector<8x8xf32>
    %60 = arith.subf %56, %59 : vector<8x8xf32>
    %61 = math.exp %60 : vector<8x8xf32>
    %cst_24 = arith.constant dense<0.000000e+00> : vector<8xf32>
    %62 = vector.multi_reduction <add>, %61, %cst_24 [1] : vector<8x8xf32> to vector<8xf32>
    %63 = vector.shape_cast %62 : vector<8xf32> to vector<8x1xf32>
    %cst_25 = arith.constant 1.000000e+00 : f32
    %64 = vector.broadcast %cst_25 : f32 to vector<8x1xf32>
    %65 = arith.divf %64, %63 : vector<8x1xf32>
    %66 = vector.extract_strided_slice %5 {offsets = [0, 48], sizes = [8, 16], strides = [1, 1]} : vector<8x64xf32> to vector<8x16xf32>
    %cst_26 = arith.constant dense<0.000000e+00> : vector<8x16xf32>
    %67 = tpu.matmul %61, %66, %cst_26 {dimension_numbers = #tpu.dot_dimension_numbers<[1], [0], [0], [1], [0, 0, 1, 1], [], []>} : vector<8x8xf32>, vector<8x16xf32>, vector<8x16xf32> -> vector<8x16xf32>
    %68 = vector.broadcast %65 : vector<8x1xf32> to vector<8x16xf32>
    %69 = arith.mulf %67, %68 : vector<8x16xf32>
    %70 = tpu.concatenate %21, %37, %53, %69 in 1 : vector<8x16xf32>, vector<8x16xf32>, vector<8x16xf32>, vector<8x16xf32> -> vector<8x64xf32>
    %c0_27 = arith.constant 0 : index
    %c0_28 = arith.constant 0 : index
    %c0_29 = arith.constant 0 : index
    %71 = vector.load %arg4[%c0_27, %c0_28, %c0_29] : memref<1x8x64xf32, #tpu.memory_space<vmem>>, vector<1x8x64xf32>
    %72 = vector.shape_cast %71 : vector<1x8x64xf32> to vector<8x64xf32>
    %73 = vector.shape_cast %70 : vector<8x64xf32> to vector<1x8x64xf32>
    tpu.vector_store %arg4[%c0_27, %c0_28, %c0_29], %73 {strides = array<i32>} : memref<1x8x64xf32, #tpu.memory_space<vmem>>, vector<1x8x64xf32>,
    return
  }
  func.func @transform_0(%arg0: i32) -> (i32, i32, i32) {
    %c0_i32 = arith.constant 0 : i32
    %c0_i32_0 = arith.constant 0 : i32
    %c0_i32_1 = arith.constant 0 : i32
    return %arg0, %c0_i32, %c0_i32_0 : i32, i32, i32
  }
  func.func @transform_1(%arg0: i32) -> (i32, i32, i32) {
    %c0_i32 = arith.constant 0 : i32
    %c0_i32_0 = arith.constant 0 : i32
    %c0_i32_1 = arith.constant 0 : i32
    return %arg0, %c0_i32, %c0_i32_0 : i32, i32, i32
  }
  func.func @transform_2(%arg0: i32) -> (i32, i32, i32) {
    %c0_i32 = arith.constant 0 : i32
    %c0_i32_0 = arith.constant 0 : i32
    %c0_i32_1 = arith.constant 0 : i32
    return %arg0, %c0_i32, %c0_i32_0 : i32, i32, i32
  }
  func.func @transform_3(%arg0: i32) -> (i32, i32, i32) {
    %c0_i32 = arith.constant 0 : i32
    %c0_i32_0 = arith.constant 0 : i32
    %c0_i32_1 = arith.constant 0 : i32
    return %arg0, %c0_i32, %c0_i32_0 : i32, i32, i32
  }
}

</mosaic_0001>

<llo_original>
// kernel: complex_mha_forward.4
$region0: #{complex_mha_forward.4}
  #allocation0 [shape = 'u32[]', space=smem, size = 0x4, offset = 0x4, fixed_abs, tag = 'smem constant byte address 0x4 - core index']
  #allocation1 [shape = 'u32[72,128]{1,0:T(1,128)}', space=vmem, size = 0x9000, scoped, tag = 'internal scratch']
  %s0 = inlined_call_operand.vmem [shape: f32[2,8,64], index: 0, kind: input, shape index: {}]
  %s1 = inlined_call_operand.vmem [shape: f32[2,8,64], index: 1, kind: input, shape index: {}]
  %s2 = inlined_call_operand.vmem [shape: f32[2,8,64], index: 2, kind: input, shape index: {}]
  %s3 = inlined_call_operand.vmem [shape: f32[2,8,64], index: 3, kind: output, shape index: {}]
  %s4 = sld [smem:[#allocation0]]
  $region45: #{complex_mha_forward.4} parent=0
    _
  %s6 = ssub.s32 1, %s4
  %s7 = scalar_select 0, %s6, %s4
  loop: start=0, step=1, limit=4
  $region2: #{complex_mha_forward.4} parent=0 // loop_pre_header
    _
  $region3: #{complex_mha_forward.4} parent=0 // loop_header
    %s9 = sphi 0, %s13
    %p10 = scmp.ge.s32.totalorder %s9, 4
    %s19 = sphi 0, %s21
    %s22 = sphi 0, %s19
    %s23 = sphi 0, %s22
    %s39 = sphi 0, %s23
    %s45 = sphi 0, %s47
    %s48 = sphi 0, %s45
    %s49 = sphi 0, %s48
    %s65 = sphi 0, %s49
    %s71 = sphi 0, %s73
    %s74 = sphi 0, %s71
    %s75 = sphi 0, %s74
    %s91 = sphi 0, %s75
    %s97 = sphi 0, %s99
    %s100 = sphi 0, %s97
    %s101 = sphi 0, %s100
    %s117 = sphi 0, %s101
  $region4: #{complex_mha_forward.4} parent=0 // loop_header_branch
    %12 = sbr.rel (%p10) target = $region8
  $region5: #{complex_mha_forward.4} parent=0 // loop_body
    %s14 = ssub.s32 %s9, 1
    %s15 = ssub.s32 %s9, 2
    %s16 = sadd.s32 %s9, 1
    %s17 = ssub.s32 %s9, %s16
    %p18 = scmp.eq.s32.totalorder %s17, 0
    %s20 = sadd.s32 %s19, 1
    %s21 = scalar_select %p18, %s19, %s20
    %p24 = pneg %p18
    %p25 = scmp.eq.s32.totalorder %s9, 1
    %p26 = por %p24, %p25
    %p27 = scmp.ne.s32.totalorder %s19, %s22
    %p28 = scmp.eq.s32.totalorder %s9, 0
    %p29 = por %p27, %p28
    %p30 = scmp.ne.s32.totalorder %s19, %s22
    %p31 = scmp.eq.s32.totalorder %s14, 1
    %p32 = por %p30, %p31
    %p33 = scmp.ne.s32.totalorder %s22, %s23
    %p34 = scmp.eq.s32.totalorder %s14, 0
    %p35 = por %p33, %p34
    %p36 = scmp.ne.s32.totalorder %s22, %s23
    %p37 = scmp.eq.s32.totalorder %s15, 1
    %p38 = por %p36, %p37
    %p40 = scmp.ne.s32.totalorder %s23, %s39
    %p41 = scmp.eq.s32.totalorder %s15, 0
    %p42 = por %p40, %p41
    %s43 = ssub.s32 %s9, %s16
    %p44 = scmp.eq.s32.totalorder %s43, 0
    %s46 = sadd.s32 %s45, 1
    %s47 = scalar_select %p44, %s45, %s46
    %p50 = pneg %p44
    %p51 = scmp.eq.s32.totalorder %s9, 1
    %p52 = por %p50, %p51
    %p53 = scmp.ne.s32.totalorder %s45, %s48
    %p54 = scmp.eq.s32.totalorder %s9, 0
    %p55 = por %p53, %p54
    %p56 = scmp.ne.s32.totalorder %s45, %s48
    %p57 = scmp.eq.s32.totalorder %s14, 1
    %p58 = por %p56, %p57
    %p59 = scmp.ne.s32.totalorder %s48, %s49
    %p60 = scmp.eq.s32.totalorder %s14, 0
    %p61 = por %p59, %p60
    %p62 = scmp.ne.s32.totalorder %s48, %s49
    %p63 = scmp.eq.s32.totalorder %s15, 1
    %p64 = por %p62, %p63
    %p66 = scmp.ne.s32.totalorder %s49, %s65
    %p67 = scmp.eq.s32.totalorder %s15, 0
    %p68 = por %p66, %p67
    %s69 = ssub.s32 %s9, %s16
    %p70 = scmp.eq.s32.totalorder %s69, 0
    %s72 = sadd.s32 %s71, 1
    %s73 = scalar_select %p70, %s71, %s72
    %p76 = pneg %p70
    %p77 = scmp.eq.s32.totalorder %s9, 1
    %p78 = por %p76, %p77
    %p79 = scmp.ne.s32.totalorder %s71, %s74
    %p80 = scmp.eq.s32.totalorder %s9, 0
    %p81 = por %p79, %p80
    %p82 = scmp.ne.s32.totalorder %s71, %s74
    %p83 = scmp.eq.s32.totalorder %s14, 1
    %p84 = por %p82, %p83
    %p85 = scmp.ne.s32.totalorder %s74, %s75
    %p86 = scmp.eq.s32.totalorder %s14, 0
    %p87 = por %p85, %p86
    %p88 = scmp.ne.s32.totalorder %s74, %s75
    %p89 = scmp.eq.s32.totalorder %s15, 1
    %p90 = por %p88, %p89
    %p92 = scmp.ne.s32.totalorder %s75, %s91
    %p93 = scmp.eq.s32.totalorder %s15, 0
    %p94 = por %p92, %p93
    %s95 = ssub.s32 %s9, %s16
    %p96 = scmp.eq.s32.totalorder %s95, 0
    %s98 = sadd.s32 %s97, 1
    %s99 = scalar_select %p96, %s97, %s98
    %p102 = pneg %p96
    %p103 = scmp.eq.s32.totalorder %s9, 1
    %p104 = por %p102, %p103
    %p105 = scmp.ne.s32.totalorder %s97, %s100
    %p106 = scmp.eq.s32.totalorder %s9, 0
    %p107 = por %p105, %p106
    %p108 = scmp.ne.s32.totalorder %s97, %s100
    %p109 = scmp.eq.s32.totalorder %s14, 1
    %p110 = por %p108, %p109
    %p111 = scmp.ne.s32.totalorder %s100, %s101
    %p112 = scmp.eq.s32.totalorder %s14, 0
    %p113 = por %p111, %p112
    %p114 = scmp.ne.s32.totalorder %s100, %s101
    %p115 = scmp.eq.s32.totalorder %s15, 1
    %p116 = por %p114, %p115
    %p118 = scmp.ne.s32.totalorder %s101, %s117
    %p119 = scmp.eq.s32.totalorder %s15, 0
    %p120 = por %p118, %p119
    %p121 = scmp.le.s32.totalorder 1, %s9
    %p122 = scmp.lt.s32.totalorder %s9, 3
    %p123 = pnand %p121, %p122
    %p124 = pneg %p123
    // Predicated region
    $region9: #{complex_mha_forward.4} parent=5 // pred_check
      _
    $region10: #{complex_mha_forward.4} parent=5 // pred_check_branch
      %126 = sbr.rel (%p123) target = $region12
    $region11: #{complex_mha_forward.4} parent=5 // pred_region
      %s127 = ssub.s32 %s9, 1
    $region12: #{complex_mha_forward.4} parent=5 // pred_fallthru
      _
    %p128 = scmp.lt.s32.totalorder %s9, 2
    // Predicated region
    $region13: #{complex_mha_forward.4} parent=5 // pred_check
      %p129 = pneg %p128
    $region14: #{complex_mha_forward.4} parent=5 // pred_check_branch
      %131 = sbr.rel (%p129) target = $region16
    $region15: #{complex_mha_forward.4} parent=5 // pred_region
      // Predicated region
      $region17: #{complex_mha_forward.4} parent=15 // pred_check
        %p132 = pneg %p29
      $region18: #{complex_mha_forward.4} parent=15 // pred_check_branch
        %134 = sbr.rel (%p132) target = $region20
      $region19: #{complex_mha_forward.4} parent=15 // pred_region
        %p135 = scmp.lt.s32.totalorder %s9, 1
        %s136 = scalar_select %p135, %s9, 1
        %s137 = smul.addr %s136, 8
        %s138 = scalar_lea.vmem %s0, %s137
      $region20: #{complex_mha_forward.4} parent=15 // pred_fallthru
        _
      // Predicated region
      $region21: #{complex_mha_forward.4} parent=15 // pred_check
        %p139 = pneg %p55
      $region22: #{complex_mha_forward.4} parent=15 // pred_check_branch
        %141 = sbr.rel (%p139) target = $region24
      $region23: #{complex_mha_forward.4} parent=15 // pred_region
        %p142 = scmp.lt.s32.totalorder %s9, 1
        %s143 = scalar_select %p142, %s9, 1
        %s144 = smul.addr %s143, 8
        %s145 = scalar_lea.vmem %s1, %s144
      $region24: #{complex_mha_forward.4} parent=15 // pred_fallthru
        _
      // Predicated region
      $region25: #{complex_mha_forward.4} parent=15 // pred_check
        %p146 = pneg %p81
      $region26: #{complex_mha_forward.4} parent=15 // pred_check_branch
        %148 = sbr.rel (%p146) target = $region28
      $region27: #{complex_mha_forward.4} parent=15 // pred_region
        %p149 = scmp.lt.s32.totalorder %s9, 1
        %s150 = scalar_select %p149, %s9, 1
        %s151 = smul.addr %s150, 8
        %s152 = scalar_lea.vmem %s2, %s151
      $region28: #{complex_mha_forward.4} parent=15 // pred_fallthru
        _
    $region16: #{complex_mha_forward.4} parent=5 // pred_fallthru
      _
    %p153 = scmp.le.s32.totalorder 1, %s9
    %p154 = scmp.lt.s32.totalorder %s9, 3
    %p155 = pnand %p153, %p154
    %p156 = pneg %p155
    // Predicated region
    $region29: #{complex_mha_forward.4} parent=5 // pred_check
      _
    $region30: #{complex_mha_forward.4} parent=5 // pred_check_branch
      %158 = sbr.rel (%p155) target = $region32
    $region31: #{complex_mha_forward.4} parent=5 // pred_region
      %s159 = ssub.s32 %s9, 1
      %p160 = scmp.lt.s32.totalorder %s14, 1
      %s161 = scalar_select %p160, %s14, 1
      %s162 = smul.addr %s161, 8
      %s163 = scalar_lea.vmem %s0, %s162
      %p164 = pneg %p35
      %p165 = pneg %p32
      %p166 = scmp.lt.s32.totalorder %s14, 1
      %s167 = scalar_select %p166, %s14, 1
      %s168 = smul.addr %s167, 8
      %s169 = scalar_lea.vmem %s1, %s168
      %p170 = pneg %p61
      %p171 = pneg %p58
      %p172 = scmp.lt.s32.totalorder %s14, 1
      %s173 = scalar_select %p172, %s14, 1
      %s174 = smul.addr %s173, 8
      %s175 = scalar_lea.vmem %s2, %s174
      %p176 = pneg %p87
      %p177 = pneg %p84
      %p178 = pneg %p113
      %p179 = pneg %p110
      %p180 = scmp.lt.s32.totalorder %s14, 1
      %s181 = scalar_select %p180, %s14, 1
      %s182 = smul.addr %s181, 8
      %s183 = scalar_lea.vmem %s3, %s182
      %p184 = scmp.lt.s32.totalorder %s14, 1
      %s185 = scalar_select %p184, %s14, 1
      %s186 = smul.addr %s185, 8
      %s187 = scalar_lea.vmem %s0, %s186
      %p188 = scmp.lt.s32.totalorder %s14, 1
      %s189 = scalar_select %p188, %s14, 1
      %s190 = smul.addr %s189, 8
      %s191 = scalar_lea.vmem %s1, %s190
      %p192 = scmp.lt.s32.totalorder %s14, 1
      %s193 = scalar_select %p192, %s14, 1
      %s194 = smul.addr %s193, 8
      %s195 = scalar_lea.vmem %s2, %s194
      %p196 = scmp.lt.s32.totalorder %s14, 1
      %s197 = scalar_select %p196, %s14, 1
      %s198 = smul.addr %s197, 8
      %s199 = scalar_lea.vmem %s3, %s198
      %v200 = vld [vmem:[%s187] sm:$0xff]
      %v201 = vld [vmem:[%s191] sm:$0xff]
      %v202 = vld [vmem:[%s195] sm:$0xff]
      %vm203 = vcmask 130048
      %v205 = vsel %vm203, %v200, 0
      %v208 = vsel %vm203, %v201, 0
      %210 = vmatpush.xpose.msra.mxu0 0.0
      %211 = vmatpush.xpose.msra.mxu0 0.0
      %212 = vmatpush.xpose.msra.mxu0 0.0
      %213 = vmatpush.xpose.msra.mxu0 0.0
      %214 = vmatpush.xpose.msra.mxu0 0.0
      %215 = vmatpush.xpose.msra.mxu0 0.0
      %216 = vmatpush.xpose.msra.mxu0 0.0
      %217 = vmatpush.xpose.msra.mxu0 0.0
      %218 = vmatpush.xpose.msra.mxu0 0.0
      %219 = vmatpush.xpose.msra.mxu0 0.0
      %220 = vmatpush.xpose.msra.mxu0 0.0
      %221 = vmatpush.xpose.msra.mxu0 0.0
      %222 = vmatpush.xpose.msra.mxu0 0.0
      %223 = vmatpush.xpose.msra.mxu0 0.0
      %224 = vmatpush.xpose.msra.mxu0 0.0
      %225 = vmatpush.xpose.msra.mxu0 %v208
      %226 = vmatmul.f32.gmra.mxu0 %v205
      %v227 = vpop.f32.mrf.mxu0
      %v228 = vadd.f32 0.0, %v227
      %229 = vdwg.mxu0
      %vm230 = vcmask 64512
      %v231 = vsel %vm230, %v228, -inf
      %232 = vmax.xlane.f32.xlu0 %v231
      %v233 = vpop.xlane.xlu0 %232
      %v234 = vsub.f32 %v228, %v233
      %v235 = vmul.f32 %v234, 1.442695
      %v236 = vpow.pop %v235
      %v237 = vsel %vm230, %v236, 0.0
      %238 = vadd.xlane.f32.xlu0 %v237
      %v239 = vpop.xlane.xlu0 %238
      %v240 = vrcp.pop %v239
      %v241 = vmul.f32 %v239, %v240
      %v242 = vsub.f32 1.0, %v241
      %v243 = vmul.f32 %v240, %v242
      %v244 = vadd.f32 %v240, %v243
      %vm245 = vweird.f32 %v239
      %vm246 = vweird.f32 %v240
      %vm247 = vmor %vm245, %vm246
      %v248 = vsel %vm247, %v240, %v244
      %v249 = vand.u32 2147483647, %v239
      %vm250 = vcmp.eq.f32.partialorder %v249, 8.507059e+37
      %v251 = vand.u32 %v239, 2147483648
      %v252 = vor.u32 1.1754944e-38, %v251
      %v253 = vsel %vm250, %v252, %v248
      %v254 = vmul.f32 1.0, %v253
      %v256 = vsel %vm230, %v236, 0
      %258 = vmatpush.msra.mxu0 0.0
      %259 = vmatpush.msra.mxu0 0.0
      %260 = vmatpush.msra.mxu0 0.0
      %261 = vmatpush.msra.mxu0 0.0
      %262 = vmatpush.msra.mxu0 0.0
      %263 = vmatpush.msra.mxu0 0.0
      %264 = vmatpush.msra.mxu0 0.0
      %265 = vmatpush.msra.mxu0 0.0
      %266 = vmatpush.msra.mxu0 0.0
      %267 = vmatpush.msra.mxu0 0.0
      %268 = vmatpush.msra.mxu0 0.0
      %269 = vmatpush.msra.mxu0 0.0
      %270 = vmatpush.msra.mxu0 0.0
      %271 = vmatpush.msra.mxu0 0.0
      %272 = vmatpush.msra.mxu0 0.0
      %273 = vmatpush.msra.mxu0 %v202
      %274 = vmatmul.f32.gmra.mxu0 %v256
      %v275 = vpop.f32.mrf.mxu0
      %v276 = vadd.f32 0.0, %v275
      %277 = vdwg.mxu0
      %v278 = vmul.f32 %v276, %v254
      %279 = vrot.lane.b32.xlu0 %v200, 112
      %v280 = vpop.permute.xlu0 %279
      %281 = vrot.lane.b32.xlu0 %v201, 112
      %v282 = vpop.permute.xlu0 %281
      %v283 = vsel %vm203, %v280, 0
      %v285 = vsel %vm203, %v282, 0
      %287 = vmatpush.xpose.msra.mxu0 0.0
      %288 = vmatpush.xpose.msra.mxu0 0.0
      %289 = vmatpush.xpose.msra.mxu0 0.0
      %290 = vmatpush.xpose.msra.mxu0 0.0
      %291 = vmatpush.xpose.msra.mxu0 0.0
      %292 = vmatpush.xpose.msra.mxu0 0.0
      %293 = vmatpush.xpose.msra.mxu0 0.0
      %294 = vmatpush.xpose.msra.mxu0 0.0
      %295 = vmatpush.xpose.msra.mxu0 0.0
      %296 = vmatpush.xpose.msra.mxu0 0.0
      %297 = vmatpush.xpose.msra.mxu0 0.0
      %298 = vmatpush.xpose.msra.mxu0 0.0
      %299 = vmatpush.xpose.msra.mxu0 0.0
      %300 = vmatpush.xpose.msra.mxu0 0.0
      %301 = vmatpush.xpose.msra.mxu0 0.0
      %302 = vmatpush.xpose.msra.mxu0 %v285
      %303 = vmatmul.f32.gmra.mxu0 %v283
      %v304 = vpop.f32.mrf.mxu0
      %v305 = vadd.f32 0.0, %v304
      %306 = vdwg.mxu0
      %v307 = vsel %vm230, %v305, -inf
      %308 = vmax.xlane.f32.xlu0 %v307
      %v309 = vpop.xlane.xlu0 %308
      %v310 = vsub.f32 %v305, %v309
      %v311 = vmul.f32 %v310, 1.442695
      %v312 = vpow.pop %v311
      %v313 = vsel %vm230, %v312, 0.0
      %314 = vadd.xlane.f32.xlu0 %v313
      %v315 = vpop.xlane.xlu0 %314
      %v316 = vrcp.pop %v315
      %v317 = vmul.f32 %v315, %v316
      %v318 = vsub.f32 1.0, %v317
      %v319 = vmul.f32 %v316, %v318
      %v320 = vadd.f32 %v316, %v319
      %vm321 = vweird.f32 %v315
      %vm322 = vweird.f32 %v316
      %vm323 = vmor %vm321, %vm322
      %v324 = vsel %vm323, %v316, %v320
      %v325 = vand.u32 2147483647, %v315
      %vm326 = vcmp.eq.f32.partialorder %v325, 8.507059e+37
      %v327 = vand.u32 %v315, 2147483648
      %v328 = vor.u32 1.1754944e-38, %v327
      %v329 = vsel %vm326, %v328, %v324
      %v330 = vmul.f32 1.0, %v329
      %332 = vrot.lane.b32.xlu0 %v202, 112
      %v333 = vpop.permute.xlu0 %332
      %v336 = vsel %vm230, %v312, 0
      %338 = vmatpush.msra.mxu0 0.0
      %339 = vmatpush.msra.mxu0 0.0
      %340 = vmatpush.msra.mxu0 0.0
      %341 = vmatpush.msra.mxu0 0.0
      %342 = vmatpush.msra.mxu0 0.0
      %343 = vmatpush.msra.mxu0 0.0
      %344 = vmatpush.msra.mxu0 0.0
      %345 = vmatpush.msra.mxu0 0.0
      %346 = vmatpush.msra.mxu0 0.0
      %347 = vmatpush.msra.mxu0 0.0
      %348 = vmatpush.msra.mxu0 0.0
      %349 = vmatpush.msra.mxu0 0.0
      %350 = vmatpush.msra.mxu0 0.0
      %351 = vmatpush.msra.mxu0 0.0
      %352 = vmatpush.msra.mxu0 0.0
      %353 = vmatpush.msra.mxu0 %v333
      %354 = vmatmul.f32.gmra.mxu0 %v336
      %v355 = vpop.f32.mrf.mxu0
      %v356 = vadd.f32 0.0, %v355
      %357 = vdwg.mxu0
      %v358 = vmul.f32 %v356, %v330
      %359 = vrot.lane.b32.xlu0 %v200, 96
      %v360 = vpop.permute.xlu0 %359
      %361 = vrot.lane.b32.xlu0 %v201, 96
      %v362 = vpop.permute.xlu0 %361
      %v363 = vsel %vm203, %v360, 0
      %v365 = vsel %vm203, %v362, 0
      %367 = vmatpush.xpose.msra.mxu0 0.0
      %368 = vmatpush.xpose.msra.mxu0 0.0
      %369 = vmatpush.xpose.msra.mxu0 0.0
      %370 = vmatpush.xpose.msra.mxu0 0.0
      %371 = vmatpush.xpose.msra.mxu0 0.0
      %372 = vmatpush.xpose.msra.mxu0 0.0
      %373 = vmatpush.xpose.msra.mxu0 0.0
      %374 = vmatpush.xpose.msra.mxu0 0.0
      %375 = vmatpush.xpose.msra.mxu0 0.0
      %376 = vmatpush.xpose.msra.mxu0 0.0
      %377 = vmatpush.xpose.msra.mxu0 0.0
      %378 = vmatpush.xpose.msra.mxu0 0.0
      %379 = vmatpush.xpose.msra.mxu0 0.0
      %380 = vmatpush.xpose.msra.mxu0 0.0
      %381 = vmatpush.xpose.msra.mxu0 0.0
      %382 = vmatpush.xpose.msra.mxu0 %v365
      %383 = vmatmul.f32.gmra.mxu0 %v363
      %v384 = vpop.f32.mrf.mxu0
      %v385 = vadd.f32 0.0, %v384
      %386 = vdwg.mxu0
      %v387 = vsel %vm230, %v385, -inf
      %388 = vmax.xlane.f32.xlu0 %v387
      %v389 = vpop.xlane.xlu0 %388
      %v390 = vsub.f32 %v385, %v389
      %v391 = vmul.f32 %v390, 1.442695
      %v392 = vpow.pop %v391
      %v393 = vsel %vm230, %v392, 0.0
      %394 = vadd.xlane.f32.xlu0 %v393
      %v395 = vpop.xlane.xlu0 %394
      %v396 = vrcp.pop %v395
      %v397 = vmul.f32 %v395, %v396
      %v398 = vsub.f32 1.0, %v397
      %v399 = vmul.f32 %v396, %v398
      %v400 = vadd.f32 %v396, %v399
      %vm401 = vweird.f32 %v395
      %vm402 = vweird.f32 %v396
      %vm403 = vmor %vm401, %vm402
      %v404 = vsel %vm403, %v396, %v400
      %v405 = vand.u32 2147483647, %v395
      %vm406 = vcmp.eq.f32.partialorder %v405, 8.507059e+37
      %v407 = vand.u32 %v395, 2147483648
      %v408 = vor.u32 1.1754944e-38, %v407
      %v409 = vsel %vm406, %v408, %v404
      %v410 = vmul.f32 1.0, %v409
      %411 = vrot.lane.b32.xlu0 %v202, 96
      %v412 = vpop.permute.xlu0 %411
      %v415 = vsel %vm230, %v392, 0
      %417 = vmatpush.msra.mxu0 0.0
      %418 = vmatpush.msra.mxu0 0.0
      %419 = vmatpush.msra.mxu0 0.0
      %420 = vmatpush.msra.mxu0 0.0
      %421 = vmatpush.msra.mxu0 0.0
      %422 = vmatpush.msra.mxu0 0.0
      %423 = vmatpush.msra.mxu0 0.0
      %424 = vmatpush.msra.mxu0 0.0
      %425 = vmatpush.msra.mxu0 0.0
      %426 = vmatpush.msra.mxu0 0.0
      %427 = vmatpush.msra.mxu0 0.0
      %428 = vmatpush.msra.mxu0 0.0
      %429 = vmatpush.msra.mxu0 0.0
      %430 = vmatpush.msra.mxu0 0.0
      %431 = vmatpush.msra.mxu0 0.0
      %432 = vmatpush.msra.mxu0 %v412
      %433 = vmatmul.f32.gmra.mxu0 %v415
      %v434 = vpop.f32.mrf.mxu0
      %v435 = vadd.f32 0.0, %v434
      %436 = vdwg.mxu0
      %v437 = vmul.f32 %v435, %v410
      %438 = vrot.lane.b32.xlu0 %v200, 80
      %v439 = vpop.permute.xlu0 %438
      %440 = vrot.lane.b32.xlu0 %v201, 80
      %v441 = vpop.permute.xlu0 %440
      %v442 = vsel %vm203, %v439, 0
      %v444 = vsel %vm203, %v441, 0
      %446 = vmatpush.xpose.msra.mxu0 0.0
      %447 = vmatpush.xpose.msra.mxu0 0.0
      %448 = vmatpush.xpose.msra.mxu0 0.0
      %449 = vmatpush.xpose.msra.mxu0 0.0
      %450 = vmatpush.xpose.msra.mxu0 0.0
      %451 = vmatpush.xpose.msra.mxu0 0.0
      %452 = vmatpush.xpose.msra.mxu0 0.0
      %453 = vmatpush.xpose.msra.mxu0 0.0
      %454 = vmatpush.xpose.msra.mxu0 0.0
      %455 = vmatpush.xpose.msra.mxu0 0.0
      %456 = vmatpush.xpose.msra.mxu0 0.0
      %457 = vmatpush.xpose.msra.mxu0 0.0
      %458 = vmatpush.xpose.msra.mxu0 0.0
      %459 = vmatpush.xpose.msra.mxu0 0.0
      %460 = vmatpush.xpose.msra.mxu0 0.0
      %461 = vmatpush.xpose.msra.mxu0 %v444
      %462 = vmatmul.f32.gmra.mxu0 %v442
      %v463 = vpop.f32.mrf.mxu0
      %v464 = vadd.f32 0.0, %v463
      %465 = vdwg.mxu0
      %v466 = vsel %vm230, %v464, -inf
      %467 = vmax.xlane.f32.xlu0 %v466
      %v468 = vpop.xlane.xlu0 %467
      %v469 = vsub.f32 %v464, %v468
      %v470 = vmul.f32 %v469, 1.442695
      %v471 = vpow.pop %v470
      %v472 = vsel %vm230, %v471, 0.0
      %473 = vadd.xlane.f32.xlu0 %v472
      %v474 = vpop.xlane.xlu0 %473
      %v475 = vrcp.pop %v474
      %v476 = vmul.f32 %v474, %v475
      %v477 = vsub.f32 1.0, %v476
      %v478 = vmul.f32 %v475, %v477
      %v479 = vadd.f32 %v475, %v478
      %vm480 = vweird.f32 %v474
      %vm481 = vweird.f32 %v475
      %vm482 = vmor %vm480, %vm481
      %v483 = vsel %vm482, %v475, %v479
      %v484 = vand.u32 2147483647, %v474
      %vm485 = vcmp.eq.f32.partialorder %v484, 8.507059e+37
      %v486 = vand.u32 %v474, 2147483648
      %v487 = vor.u32 1.1754944e-38, %v486
      %v488 = vsel %vm485, %v487, %v483
      %v489 = vmul.f32 1.0, %v488
      %490 = vrot.lane.b32.xlu0 %v202, 80
      %v491 = vpop.permute.xlu0 %490
      %v494 = vsel %vm230, %v471, 0
      %496 = vmatpush.msra.mxu0 0.0
      %497 = vmatpush.msra.mxu0 0.0
      %498 = vmatpush.msra.mxu0 0.0
      %499 = vmatpush.msra.mxu0 0.0
      %500 = vmatpush.msra.mxu0 0.0
      %501 = vmatpush.msra.mxu0 0.0
      %502 = vmatpush.msra.mxu0 0.0
      %503 = vmatpush.msra.mxu0 0.0
      %504 = vmatpush.msra.mxu0 0.0
      %505 = vmatpush.msra.mxu0 0.0
      %506 = vmatpush.msra.mxu0 0.0
      %507 = vmatpush.msra.mxu0 0.0
      %508 = vmatpush.msra.mxu0 0.0
      %509 = vmatpush.msra.mxu0 0.0
      %510 = vmatpush.msra.mxu0 0.0
      %511 = vmatpush.msra.mxu0 %v491
      %512 = vmatmul.f32.gmra.mxu0 %v494
      %v513 = vpop.f32.mrf.mxu0
      %v514 = vadd.f32 0.0, %v513
      %515 = vdwg.mxu0
      %v516 = vmul.f32 %v514, %v489
      %518 = vrot.lane.b32.xlu0 %v358, 16
      %v519 = vpop.permute.xlu0 %518
      %522 = vrot.lane.b32.xlu0 %v437, 32
      %v523 = vpop.permute.xlu0 %522
      %526 = vrot.lane.b32.xlu0 %v516, 48
      %v527 = vpop.permute.xlu0 %526
      %v529 = vsel %vm203, %v278, %v519
      %vm530 = vcmask 261120
      %v531 = vsel %vm530, %v529, %v523
      %vm532 = vcmask 392192
      %v533 = vsel %vm532, %v531, %v527
      %vm534 = vcmask 523264
      %535 = vst.msk [vmem:[%s199] sm:$0xff] %vm534, %v533
      %p536 = scmp.lt.s32.totalorder %s14, 1
      %s537 = scalar_select %p536, %s14, 1
      %s538 = smul.addr %s537, 8
      %s539 = scalar_lea.vmem %s3, %s538
      // Predicated region
      $region33: #{complex_mha_forward.4} parent=31 // pred_check
        %p540 = pneg %p110
      $region34: #{complex_mha_forward.4} parent=31 // pred_check_branch
        %542 = sbr.rel (%p540) target = $region36
      $region35: #{complex_mha_forward.4} parent=31 // pred_region
        _
      $region36: #{complex_mha_forward.4} parent=31 // pred_fallthru
        _
    $region32: #{complex_mha_forward.4} parent=5 // pred_fallthru
      _
    %p543 = scmp.le.s32.totalorder 2, %s9
    // Predicated region
    $region37: #{complex_mha_forward.4} parent=5 // pred_check
      %p544 = pneg %p543
    $region38: #{complex_mha_forward.4} parent=5 // pred_check_branch
      %546 = sbr.rel (%p544) target = $region40
    $region39: #{complex_mha_forward.4} parent=5 // pred_region
      %s547 = ssub.s32 %s9, 2
      // Predicated region
      $region41: #{complex_mha_forward.4} parent=39 // pred_check
        %p548 = pneg %p116
      $region42: #{complex_mha_forward.4} parent=39 // pred_check_branch
        %550 = sbr.rel (%p548) target = $region44
      $region43: #{complex_mha_forward.4} parent=39 // pred_region
        %p551 = scmp.lt.s32.totalorder %s15, 1
        %s552 = scalar_select %p551, %s15, 1
        %s553 = smul.addr %s552, 8
        %s554 = scalar_lea.vmem %s3, %s553
      $region44: #{complex_mha_forward.4} parent=39 // pred_fallthru
        _
    $region40: #{complex_mha_forward.4} parent=5 // pred_fallthru
      _
  $region6: #{complex_mha_forward.4} parent=0 // loop_footer
    %s13 = sadd.s32 1, %s9
  $region7: #{complex_mha_forward.4} parent=0 // loop_footer_branch
    %8 = sbr.rel target = $region3
  $region8: #{complex_mha_forward.4} parent=0 // loop_exit
    _

// kernel: complex_mha_forward.3
$region0: #{complex_mha_forward.3}
  #allocation0 [shape = 'u32[]', space=smem, size = 0x4, offset = 0x4, fixed_abs, tag = 'smem constant byte address 0x4 - core index']
  #allocation1 [shape = 'u32[72,128]{1,0:T(1,128)}', space=vmem, size = 0x9000, scoped, tag = 'internal scratch']
  %s0 = inlined_call_operand.hbm [shape: f32[16,32], index: 0, kind: input, shape index: {}]
  %s1 = inlined_call_operand.hbm [shape: f32[16,32], index: 1, kind: input, shape index: {}]
  %s2 = inlined_call_operand.hbm [shape: f32[32,192], index: 2, kind: input, shape index: {}]
  %s3 = inlined_call_operand.hbm [shape: f32[32,192], index: 3, kind: input, shape index: {}]
  %s4 = inlined_call_operand.vmem [shape: f32[1,192], index: 4, kind: input, shape index: {}]
  %s5 = inlined_call_operand.vmem [shape: f32[16,64], index: 5, kind: output, shape index: {0}]
  %s6 = inlined_call_operand.vmem [shape: f32[16,64], index: 6, kind: output, shape index: {1}]
  %s7 = inlined_call_operand.vmem [shape: f32[16,64], index: 7, kind: output, shape index: {2}]
  %8 = xla_tuple %s5, %s6, %s7
  %s9 = sld [smem:[#allocation0]]
  $region62: #{complex_mha_forward.3} parent=0
    _
  %s11 = ssub.s32 1, %s9
  %s12 = scalar_select 0, %s11, %s9
  $region1: #{complex_mha_forward.3} parent=0
    #allocation2 [shape = 'u8[8192]{0}', space=vmem, size = 0x2000, scoped, tag = 'input window, operand 0, single buffered']
    #allocation3 [shape = 's32[1]{0}', space=sflag, size = 0x4, scoped, tag = 'scoped memory for complex_mha_forward.3']
    #allocation4 [shape = 'u8[8192]{0}', space=vmem, size = 0x2000, scoped, tag = 'input window, operand 1, single buffered']
    #allocation5 [shape = 's32[1]{0}', space=sflag, size = 0x4, scoped, tag = 'scoped memory for complex_mha_forward.3']
    #allocation6 [shape = 'u8[32768]{0}', space=vmem, size = 0x8000, scoped, tag = 'input window, operand 2, single buffered']
    #allocation7 [shape = 'u8[32768]{0}', space=vmem, size = 0x8000, scoped, tag = 'input window, operand 3, single buffered']
    #allocation8 [shape = 's32[1]{0}', space=sflag, size = 0x4, scoped, tag = 'scoped memory for complex_mha_forward.3']
    %13 = vsyncpa [#allocation3], 0
    %14 = vsyncpa [#allocation5], 0
    %15 = vsyncpa [#allocation8], 0
    // Predicated region
    $region2: #{complex_mha_forward.3} parent=1 // pred_check
      _
    $region3: #{complex_mha_forward.3} parent=1 // pred_check_branch
      %17 = sbr.rel (0) target = $region5
    $region4: #{complex_mha_forward.3} parent=1 // pred_region
      %19 = vsyncadd [#allocation3], 0
      %s20 = sshll.u32 %s0, 4
      %s21 = int_to_ptr.hbm [resolvable:$true] %s20
      %s22 = sshll.u32 [#allocation2], 4
      %s23 = int_to_ptr.vmem [resolvable:$true] %s22
      %28 = dma.hbm_to_vmem [thread:$0]  %s21, 256, %s23, [#allocation3], 128, 128, 8
    $region5: #{complex_mha_forward.3} parent=1 // pred_fallthru
      _
    // Predicated region
    $region6: #{complex_mha_forward.3} parent=1 // pred_check
      _
    $region7: #{complex_mha_forward.3} parent=1 // pred_check_branch
      %30 = sbr.rel (0) target = $region9
    $region8: #{complex_mha_forward.3} parent=1 // pred_region
      %32 = vsyncadd [#allocation5], 0
      %s33 = sshll.u32 %s1, 4
      %s34 = int_to_ptr.hbm [resolvable:$true] %s33
      %s35 = sshll.u32 [#allocation4], 4
      %s36 = int_to_ptr.vmem [resolvable:$true] %s35
      %41 = dma.hbm_to_vmem [thread:$0]  %s34, 256, %s36, [#allocation5], 128, 128, 8
    $region9: #{complex_mha_forward.3} parent=1 // pred_fallthru
      _
    // Predicated region
    $region10: #{complex_mha_forward.3} parent=1 // pred_check
      _
    $region11: #{complex_mha_forward.3} parent=1 // pred_check_branch
      %43 = sbr.rel (0) target = $region13
    $region12: #{complex_mha_forward.3} parent=1 // pred_region
      %45 = vsyncadd [#allocation5], 0
      %s46 = sshll.u32 %s2, 4
      %s47 = int_to_ptr.hbm [resolvable:$true] %s46
      %s48 = sshll.u32 [#allocation6], 4
      %s49 = int_to_ptr.vmem [resolvable:$true] %s48
      %54 = dma.hbm_to_vmem [thread:$0]  %s47, 1024, %s49, [#allocation5], 256, 256, 16
    $region13: #{complex_mha_forward.3} parent=1 // pred_fallthru
      _
    // Predicated region
    $region14: #{complex_mha_forward.3} parent=1 // pred_check
      _
    $region15: #{complex_mha_forward.3} parent=1 // pred_check_branch
      %56 = sbr.rel (0) target = $region17
    $region16: #{complex_mha_forward.3} parent=1 // pred_region
      %58 = vsyncadd [#allocation8], 0
      %s59 = sshll.u32 %s3, 4
      %s60 = int_to_ptr.hbm [resolvable:$true] %s59
      %s61 = sshll.u32 [#allocation7], 4
      %s62 = int_to_ptr.vmem [resolvable:$true] %s61
      %67 = dma.hbm_to_vmem [thread:$0]  %s60, 1024, %s62, [#allocation8], 256, 256, 16
    $region17: #{complex_mha_forward.3} parent=1 // pred_fallthru
      _
    // Predicated region
    $region18: #{complex_mha_forward.3} parent=1 // pred_check
      _
    $region19: #{complex_mha_forward.3} parent=1 // pred_check_branch
      %69 = sbr.rel (0) target = $region21
    $region20: #{complex_mha_forward.3} parent=1 // pred_region
      _
    $region21: #{complex_mha_forward.3} parent=1 // pred_fallthru
      _
    // Predicated region
    $region22: #{complex_mha_forward.3} parent=1 // pred_check
      _
    $region23: #{complex_mha_forward.3} parent=1 // pred_check_branch
      %71 = sbr.rel (0) target = $region25
    $region24: #{complex_mha_forward.3} parent=1 // pred_region
      %73 = dma.done [#allocation3], 256
    $region25: #{complex_mha_forward.3} parent=1 // pred_fallthru
      _
    // Predicated region
    $region26: #{complex_mha_forward.3} parent=1 // pred_check
      _
    $region27: #{complex_mha_forward.3} parent=1 // pred_check_branch
      %75 = sbr.rel (0) target = $region29
    $region28: #{complex_mha_forward.3} parent=1 // pred_region
      %77 = dma.done [#allocation5], 256
    $region29: #{complex_mha_forward.3} parent=1 // pred_fallthru
      _
    // Predicated region
    $region30: #{complex_mha_forward.3} parent=1 // pred_check
      _
    $region31: #{complex_mha_forward.3} parent=1 // pred_check_branch
      %79 = sbr.rel (0) target = $region33
    $region32: #{complex_mha_forward.3} parent=1 // pred_region
      %81 = dma.done [#allocation5], 1024
    $region33: #{complex_mha_forward.3} parent=1 // pred_fallthru
      _
    // Predicated region
    $region34: #{complex_mha_forward.3} parent=1 // pred_check
      _
    $region35: #{complex_mha_forward.3} parent=1 // pred_check_branch
      %83 = sbr.rel (0) target = $region37
    $region36: #{complex_mha_forward.3} parent=1 // pred_region
      %85 = dma.done [#allocation8], 1024
    $region37: #{complex_mha_forward.3} parent=1 // pred_fallthru
      _
    %v86 = vld [vmem:[#allocation2] sm:$0xff]
    %v87 = vld [vmem:[#allocation2 + $0x8] sm:$0xff]
    %v88 = vld [vmem:[#allocation6] sm:$0xff]
    %v89 = vld [vmem:[#allocation6 + $0x8] sm:$0xff]
    %v90 = vld [vmem:[#allocation6 + $0x10] sm:$0xff]
    %v91 = vld [vmem:[#allocation6 + $0x18] sm:$0xff]
    %v92 = vld [vmem:[#allocation6 + $0x20] sm:$0xff]
    %v93 = vld [vmem:[#allocation6 + $0x28] sm:$0xff]
    %v94 = vld [vmem:[#allocation6 + $0x30] sm:$0xff]
    %v95 = vld [vmem:[#allocation6 + $0x38] sm:$0xff]
    %v96 = vld [vmem:[#allocation4] sm:$0xff]
    %v97 = vld [vmem:[#allocation4 + $0x8] sm:$0xff]
    %v98 = vld [vmem:[#allocation7] sm:$0xff]
    %v99 = vld [vmem:[#allocation7 + $0x8] sm:$0xff]
    %v100 = vld [vmem:[#allocation7 + $0x10] sm:$0xff]
    %v101 = vld [vmem:[#allocation7 + $0x18] sm:$0xff]
    %v102 = vld [vmem:[#allocation7 + $0x20] sm:$0xff]
    %v103 = vld [vmem:[#allocation7 + $0x28] sm:$0xff]
    %v104 = vld [vmem:[#allocation7 + $0x30] sm:$0xff]
    %v105 = vld [vmem:[#allocation7 + $0x38] sm:$0xff]
    %vm106 = vcmask 261120
    %v108 = vsel %vm106, %v96, 0
    %v111 = vsel %vm106, %v97, 0
    %113 = vmatpush.msra.mxu0 0.0
    %114 = vmatpush.msra.mxu0 0.0
    %115 = vmatpush.msra.mxu0 0.0
    %116 = vmatpush.msra.mxu0 0.0
    %117 = vmatpush.msra.mxu0 0.0
    %118 = vmatpush.msra.mxu0 0.0
    %119 = vmatpush.msra.mxu0 0.0
    %120 = vmatpush.msra.mxu0 0.0
    %121 = vmatpush.msra.mxu0 0.0
    %122 = vmatpush.msra.mxu0 0.0
    %123 = vmatpush.msra.mxu0 0.0
    %124 = vmatpush.msra.mxu0 0.0
    %125 = vmatpush.msra.mxu0 %v104
    %126 = vmatpush.msra.mxu0 %v102
    %127 = vmatpush.msra.mxu0 %v100
    %128 = vmatpush.msra.mxu0 %v98
    %129 = vmatmul.f32.gmra.mxu0 %v108
    %v130 = vpop.f32.mrf.mxu0
    %v131 = vadd.f32 0.0, %v130
    %132 = vmatmul.f32.gmra.mxu0 %v111
    %v133 = vpop.f32.mrf.mxu0
    %v134 = vadd.f32 0.0, %v133
    %135 = vdwg.mxu0
    %136 = vmatpush.msra.mxu0 0.0
    %137 = vmatpush.msra.mxu0 0.0
    %138 = vmatpush.msra.mxu0 0.0
    %139 = vmatpush.msra.mxu0 0.0
    %140 = vmatpush.msra.mxu0 0.0
    %141 = vmatpush.msra.mxu0 0.0
    %142 = vmatpush.msra.mxu0 0.0
    %143 = vmatpush.msra.mxu0 0.0
    %144 = vmatpush.msra.mxu0 0.0
    %145 = vmatpush.msra.mxu0 0.0
    %146 = vmatpush.msra.mxu0 0.0
    %147 = vmatpush.msra.mxu0 0.0
    %148 = vmatpush.msra.mxu0 %v105
    %149 = vmatpush.msra.mxu0 %v103
    %150 = vmatpush.msra.mxu0 %v101
    %151 = vmatpush.msra.mxu0 %v99
    %152 = vmatmul.f32.gmra.mxu0 %v108
    %v153 = vpop.f32.mrf.mxu0
    %v154 = vadd.f32 0.0, %v153
    %155 = vmatmul.f32.gmra.mxu0 %v111
    %v156 = vpop.f32.mrf.mxu0
    %v157 = vadd.f32 0.0, %v156
    %158 = vdwg.mxu0
    %v160 = vsel %vm106, %v86, 0
    %v163 = vsel %vm106, %v87, 0
    %165 = vmatpush.msra.mxu0 0.0
    %166 = vmatpush.msra.mxu0 0.0
    %167 = vmatpush.msra.mxu0 0.0
    %168 = vmatpush.msra.mxu0 0.0
    %169 = vmatpush.msra.mxu0 0.0
    %170 = vmatpush.msra.mxu0 0.0
    %171 = vmatpush.msra.mxu0 0.0
    %172 = vmatpush.msra.mxu0 0.0
    %173 = vmatpush.msra.mxu0 0.0
    %174 = vmatpush.msra.mxu0 0.0
    %175 = vmatpush.msra.mxu0 0.0
    %176 = vmatpush.msra.mxu0 0.0
    %177 = vmatpush.msra.mxu0 %v94
    %178 = vmatpush.msra.mxu0 %v92
    %179 = vmatpush.msra.mxu0 %v90
    %180 = vmatpush.msra.mxu0 %v88
    %181 = vmatmul.f32.gmra.mxu0 %v160
    %v182 = vpop.f32.mrf.mxu0
    %v183 = vadd.f32 %v131, %v182
    %184 = vmatmul.f32.gmra.mxu0 %v163
    %v185 = vpop.f32.mrf.mxu0
    %v186 = vadd.f32 %v134, %v185
    %187 = vdwg.mxu0
    %188 = vmatpush.msra.mxu0 0.0
    %189 = vmatpush.msra.mxu0 0.0
    %190 = vmatpush.msra.mxu0 0.0
    %191 = vmatpush.msra.mxu0 0.0
    %192 = vmatpush.msra.mxu0 0.0
    %193 = vmatpush.msra.mxu0 0.0
    %194 = vmatpush.msra.mxu0 0.0
    %195 = vmatpush.msra.mxu0 0.0
    %196 = vmatpush.msra.mxu0 0.0
    %197 = vmatpush.msra.mxu0 0.0
    %198 = vmatpush.msra.mxu0 0.0
    %199 = vmatpush.msra.mxu0 0.0
    %200 = vmatpush.msra.mxu0 %v95
    %201 = vmatpush.msra.mxu0 %v93
    %202 = vmatpush.msra.mxu0 %v91
    %203 = vmatpush.msra.mxu0 %v89
    %204 = vmatmul.f32.gmra.mxu0 %v160
    %v205 = vpop.f32.mrf.mxu0
    %v206 = vadd.f32 %v154, %v205
    %207 = vmatmul.f32.gmra.mxu0 %v163
    %v208 = vpop.f32.mrf.mxu0
    %v209 = vadd.f32 %v157, %v208
    %210 = vdwg.mxu0
    %v211 = vld [vmem:[%s4] sm:$0x3]
    %v213 = vperm.slane %v211, 0
    %v214 = vperm.slane %v211, 1
    %v217 = vadd.f32 %v183, %v213
    %v218 = vadd.f32 %v206, %v214
    %v219 = vadd.f32 %v186, %v213
    %v220 = vadd.f32 %v209, %v214
    %vm221 = vcmask 523264
    %222 = vst.msk [vmem:[%s5] sm:$0xff] %vm221, %v217
    %223 = vst.msk [vmem:[%s5 + $0x8] sm:$0xff] %vm221, %v219
    %226 = vrot.lane.b32.xlu0 %v217, 64
    %v227 = vpop.permute.xlu0 %226
    %228 = vrot.lane.b32.xlu0 %v219, 64
    %v229 = vpop.permute.xlu0 %228
    %232 = vst.msk [vmem:[%s6] sm:$0xff] %vm221, %v227
    %233 = vst.msk [vmem:[%s6 + $0x8] sm:$0xff] %vm221, %v229
    %234 = vst.msk [vmem:[%s7] sm:$0xff] %vm221, %v218
    %235 = vst.msk [vmem:[%s7 + $0x8] sm:$0xff] %vm221, %v220
    // Predicated region
    $region38: #{complex_mha_forward.3} parent=1 // pred_check
      _
    $region39: #{complex_mha_forward.3} parent=1 // pred_check_branch
      %237 = sbr.rel (0) target = $region41
    $region40: #{complex_mha_forward.3} parent=1 // pred_region
      _
    $region41: #{complex_mha_forward.3} parent=1 // pred_fallthru
      _
    // Predicated region
    $region42: #{complex_mha_forward.3} parent=1 // pred_check
      _
    $region43: #{complex_mha_forward.3} parent=1 // pred_check_branch
      %239 = sbr.rel (0) target = $region45
    $region44: #{complex_mha_forward.3} parent=1 // pred_region
      _
    $region45: #{complex_mha_forward.3} parent=1 // pred_fallthru
      _
    // Predicated region
    $region46: #{complex_mha_forward.3} parent=1 // pred_check
      _
    $region47: #{complex_mha_forward.3} parent=1 // pred_check_branch
      %241 = sbr.rel (0) target = $region49
    $region48: #{complex_mha_forward.3} parent=1 // pred_region
      _
    $region49: #{complex_mha_forward.3} parent=1 // pred_fallthru
      _
    // Predicated region
    $region50: #{complex_mha_forward.3} parent=1 // pred_check
      _
    $region51: #{complex_mha_forward.3} parent=1 // pred_check_branch
      %243 = sbr.rel (0) target = $region53
    $region52: #{complex_mha_forward.3} parent=1 // pred_region
      _
    $region53: #{complex_mha_forward.3} parent=1 // pred_fallthru
      _
    // Predicated region
    $region54: #{complex_mha_forward.3} parent=1 // pred_check
      _
    $region55: #{complex_mha_forward.3} parent=1 // pred_check_branch
      %245 = sbr.rel (0) target = $region57
    $region56: #{complex_mha_forward.3} parent=1 // pred_region
      _
    $region57: #{complex_mha_forward.3} parent=1 // pred_fallthru
      _
    // Predicated region
    $region58: #{complex_mha_forward.3} parent=1 // pred_check
      _
    $region59: #{complex_mha_forward.3} parent=1 // pred_check_branch
      %247 = sbr.rel (0) target = $region61
    $region60: #{complex_mha_forward.3} parent=1 // pred_region
      _
    $region61: #{complex_mha_forward.3} parent=1 // pred_fallthru
      _
    %248 = vsyncpa [#allocation3], 1
    %249 = vsyncpa [#allocation5], 1
    %250 = vsyncpa [#allocation8], 1

// kernel: complex_mha_forward.5
$region0: #{complex_mha_forward.5}
  #allocation0 [shape = 'u32[]', space=smem, size = 0x4, offset = 0x4, fixed_abs, tag = 'smem constant byte address 0x4 - core index']
  #allocation1 [shape = 'u32[72,128]{1,0:T(1,128)}', space=vmem, size = 0x9000, scoped, tag = 'internal scratch']
  %s0 = inlined_call_operand.vmem [shape: f32[16,64], index: 0, kind: input, shape index: {}]
  %s1 = inlined_call_operand.hbm [shape: f32[64,64], index: 1, kind: input, shape index: {}]
  %s2 = inlined_call_operand.vmem [shape: f32[1,64], index: 2, kind: input, shape index: {}]
  %s3 = inlined_call_operand.hbm [shape: f32[16,32], index: 3, kind: output, shape index: {0}]
  %s4 = inlined_call_operand.hbm [shape: f32[16,32], index: 4, kind: output, shape index: {1}]
  %5 = xla_tuple %s3, %s4
  %s6 = sld [smem:[#allocation0]]
  $region34: #{complex_mha_forward.5} parent=0
    _
  %s8 = ssub.s32 1, %s6
  %s9 = scalar_select 0, %s8, %s6
  $region1: #{complex_mha_forward.5} parent=0
    #allocation2 [shape = 'u8[32768]{0}', space=vmem, size = 0x8000, scoped, tag = 'input window, operand 1, single buffered']
    #allocation3 [shape = 's32[1]{0}', space=sflag, size = 0x4, scoped, tag = 'scoped memory for complex_mha_forward.5']
    #allocation4 [shape = 's32[1]{0}', space=sflag, size = 0x4, scoped, tag = 'scoped memory for complex_mha_forward.5']
    #allocation5 [shape = 'u8[8192]{0}', space=vmem, size = 0x2000, scoped, tag = 'output window, operand 0, single buffered']
    #allocation6 [shape = 'u8[8192]{0}', space=vmem, size = 0x2000, scoped, tag = 'output window, operand 1, single buffered']
    #allocation7 [shape = 's32[1]{0}', space=sflag, size = 0x4, scoped, tag = 'scoped memory for complex_mha_forward.5']
    %10 = vsyncpa [#allocation3], 0
    %11 = vsyncpa [#allocation4], 0
    %12 = vsyncpa [#allocation7], 0
    // Predicated region
    $region2: #{complex_mha_forward.5} parent=1 // pred_check
      _
    $region3: #{complex_mha_forward.5} parent=1 // pred_check_branch
      %14 = sbr.rel (0) target = $region5
    $region4: #{complex_mha_forward.5} parent=1 // pred_region
      _
    $region5: #{complex_mha_forward.5} parent=1 // pred_fallthru
      _
    // Predicated region
    $region6: #{complex_mha_forward.5} parent=1 // pred_check
      _
    $region7: #{complex_mha_forward.5} parent=1 // pred_check_branch
      %16 = sbr.rel (0) target = $region9
    $region8: #{complex_mha_forward.5} parent=1 // pred_region
      %18 = vsyncadd [#allocation3], 0
      %s19 = sshll.u32 %s1, 4
      %s20 = int_to_ptr.hbm [resolvable:$true] %s19
      %s21 = sshll.u32 [#allocation2], 4
      %s22 = int_to_ptr.vmem [resolvable:$true] %s21
      %27 = dma.hbm_to_vmem [thread:$0]  %s20, 1024, %s22, [#allocation3], 128, 128, 8
    $region9: #{complex_mha_forward.5} parent=1 // pred_fallthru
      _
    // Predicated region
    $region10: #{complex_mha_forward.5} parent=1 // pred_check
      _
    $region11: #{complex_mha_forward.5} parent=1 // pred_check_branch
      %29 = sbr.rel (0) target = $region13
    $region12: #{complex_mha_forward.5} parent=1 // pred_region
      _
    $region13: #{complex_mha_forward.5} parent=1 // pred_fallthru
      _
    // Predicated region
    $region14: #{complex_mha_forward.5} parent=1 // pred_check
      _
    $region15: #{complex_mha_forward.5} parent=1 // pred_check_branch
      %31 = sbr.rel (0) target = $region17
    $region16: #{complex_mha_forward.5} parent=1 // pred_region
      %33 = dma.done [#allocation3], 1024
    $region17: #{complex_mha_forward.5} parent=1 // pred_fallthru
      _
    %v34 = vld [vmem:[%s0] sm:$0xff]
    %v35 = vld [vmem:[%s0 + $0x8] sm:$0xff]
    %v36 = vld [vmem:[#allocation2] sm:$0xff]
    %v37 = vld [vmem:[#allocation2 + $0x8] sm:$0xff]
    %v38 = vld [vmem:[#allocation2 + $0x10] sm:$0xff]
    %v39 = vld [vmem:[#allocation2 + $0x18] sm:$0xff]
    %v40 = vld [vmem:[#allocation2 + $0x20] sm:$0xff]
    %v41 = vld [vmem:[#allocation2 + $0x28] sm:$0xff]
    %v42 = vld [vmem:[#allocation2 + $0x30] sm:$0xff]
    %v43 = vld [vmem:[#allocation2 + $0x38] sm:$0xff]
    %v44 = vld [vmem:[%s2] sm:$0x1]
    %v46 = vperm.slane %v44, 0
    %vm48 = vcmask 523264
    %v50 = vsel %vm48, %v34, 0
    %v53 = vsel %vm48, %v35, 0
    %55 = vmatpush.msra.mxu0 0.0
    %56 = vmatpush.msra.mxu0 0.0
    %57 = vmatpush.msra.mxu0 0.0
    %58 = vmatpush.msra.mxu0 0.0
    %59 = vmatpush.msra.mxu0 0.0
    %60 = vmatpush.msra.mxu0 0.0
    %61 = vmatpush.msra.mxu0 0.0
    %62 = vmatpush.msra.mxu0 0.0
    %63 = vmatpush.msra.mxu0 %v43
    %64 = vmatpush.msra.mxu0 %v42
    %65 = vmatpush.msra.mxu0 %v41
    %66 = vmatpush.msra.mxu0 %v40
    %67 = vmatpush.msra.mxu0 %v39
    %68 = vmatpush.msra.mxu0 %v38
    %69 = vmatpush.msra.mxu0 %v37
    %70 = vmatpush.msra.mxu0 %v36
    %71 = vmatmul.f32.gmra.mxu0 %v50
    %v72 = vpop.f32.mrf.mxu0
    %v73 = vadd.f32 %v46, %v72
    %74 = vmatmul.f32.gmra.mxu0 %v53
    %v75 = vpop.f32.mrf.mxu0
    %v76 = vadd.f32 %v46, %v75
    %77 = vdwg.mxu0
    %vm78 = vcmask 261120
    %79 = vst.msk [vmem:[#allocation5] sm:$0xff] %vm78, %v73
    %80 = vst.msk [vmem:[#allocation5 + $0x8] sm:$0xff] %vm78, %v76
    %83 = vrot.lane.b32.xlu0 %v73, 96
    %v84 = vpop.permute.xlu0 %83
    %85 = vrot.lane.b32.xlu0 %v76, 96
    %v86 = vpop.permute.xlu0 %85
    %89 = vst.msk [vmem:[#allocation6] sm:$0xff] %vm78, %v84
    %90 = vst.msk [vmem:[#allocation6 + $0x8] sm:$0xff] %vm78, %v86
    // Predicated region
    $region18: #{complex_mha_forward.5} parent=1 // pred_check
      _
    $region19: #{complex_mha_forward.5} parent=1 // pred_check_branch
      %92 = sbr.rel (0) target = $region21
    $region20: #{complex_mha_forward.5} parent=1 // pred_region
      %94 = vsyncadd [#allocation4], 0
      %s95 = sshll.u32 [#allocation5], 4
      %s96 = int_to_ptr.vmem [resolvable:$true] %s95
      %s97 = sshll.u32 %s3, 4
      %s98 = int_to_ptr.hbm [resolvable:$true] %s97
      %103 = dma.vmem_to_hbm [thread:$0]  %s96, 256, %s98, [#allocation4], 128, 128, 8
    $region21: #{complex_mha_forward.5} parent=1 // pred_fallthru
      _
    // Predicated region
    $region22: #{complex_mha_forward.5} parent=1 // pred_check
      _
    $region23: #{complex_mha_forward.5} parent=1 // pred_check_branch
      %105 = sbr.rel (0) target = $region25
    $region24: #{complex_mha_forward.5} parent=1 // pred_region
      %107 = vsyncadd [#allocation7], 0
      %s108 = sshll.u32 [#allocation6], 4
      %s109 = int_to_ptr.vmem [resolvable:$true] %s108
      %s110 = sshll.u32 %s4, 4
      %s111 = int_to_ptr.hbm [resolvable:$true] %s110
      %116 = dma.vmem_to_hbm [thread:$0]  %s109, 256, %s111, [#allocation7], 128, 128, 8
    $region25: #{complex_mha_forward.5} parent=1 // pred_fallthru
      _
    // Predicated region
    $region26: #{complex_mha_forward.5} parent=1 // pred_check
      _
    $region27: #{complex_mha_forward.5} parent=1 // pred_check_branch
      %118 = sbr.rel (0) target = $region29
    $region28: #{complex_mha_forward.5} parent=1 // pred_region
      %120 = dma.done [#allocation4], 256
    $region29: #{complex_mha_forward.5} parent=1 // pred_fallthru
      _
    // Predicated region
    $region30: #{complex_mha_forward.5} parent=1 // pred_check
      _
    $region31: #{complex_mha_forward.5} parent=1 // pred_check_branch
      %122 = sbr.rel (0) target = $region33
    $region32: #{complex_mha_forward.5} parent=1 // pred_region
      %124 = dma.done [#allocation7], 256
    $region33: #{complex_mha_forward.5} parent=1 // pred_fallthru
      _
    %125 = vsyncpa [#allocation3], 1
    %126 = vsyncpa [#allocation4], 1
    %127 = vsyncpa [#allocation7], 1

</llo_original>
